<compile_context>
chip_gen: v5e
topology: v5e:2x2
jax: 0.10.0
libtpu: 0.0.40
codegen_flags: <defaults>
</compile_context>

<pallas_src>
import functools

import jax
import jax.numpy as jnp
from jax import lax
from jax.experimental import pallas as pl
from jax.experimental.pallas import tpu as pltpu

_NUM_CORE_SPLITS = 2  # independent partial sums (maps to the 2 TCs on v7x)


# ----------------------------- Pallas kernel ------------------------------ #
def _siamese_bce_kernel(x1_ref, x2_ref, y_ref, out_ref, *,
                        tm, tiles_per_core, num_rows):
    c = pl.program_id(0)            # core-split index (parallel axis)
    i = pl.program_id(1)            # row-tile index within this split
    t = c * tiles_per_core + i      # global (unclamped) row-tile index
    row_start = t * tm

    # zero this split's resident (1,1,1) accumulator on its first step
    @pl.when(i == 0)
    def _init():
        out_ref[...] = jnp.zeros_like(out_ref)

    # upcast in VMEM (inputs stream at native dtype -> minimal HBM traffic)
    x1 = x1_ref[...].astype(jnp.float32)                     # (tm, F)
    x2 = x2_ref[...].astype(jnp.float32)                     # (tm, F)
    y = y_ref[...].astype(jnp.float32)                       # (tm, 1)

    # prod[e] = sum_f x1[e,f] * x2[e,f]  == einsum('ef,ef->e')
    z = jnp.sum(x1 * x2, axis=-1, keepdims=True)             # (tm, 1)

    # numerically stable BCE-with-logits (matches PyTorch):
    #   l = max(z, 0) - z*y + log(1 + exp(-|z|))
    per_row = (jnp.maximum(z, 0.0) - z * y
               + jnp.log1p(jnp.exp(-jnp.abs(z))))            # (tm, 1)

    is_interior = row_start + tm <= num_rows
    is_edge = row_start + tm > num_rows

    # interior tiles: no garbage rows -> plain reduce, no per-step mask cost
    @pl.when(is_interior)
    def _full():
        out_ref[...] += jnp.sum(per_row, keepdims=True)

    # ragged last tile / clamped duplicate tile: mask invalid rows
    # (jnp.where selects 0.0 even if garbage rows produced NaN/Inf)
    @pl.when(is_edge)
    def _masked():
        row_ids = row_start + lax.broadcasted_iota(jnp.int32, (tm, 1), 0)
        masked = jnp.where(row_ids < num_rows, per_row, 0.0)
        out_ref[...] += jnp.sum(masked, keepdims=True)


# ------------------------------ JAX wrapper -------------------------------- #
def _round_up(a, b):
    return ((a + b - 1) // b) * b


def _auto_tile_rows(e, f, itemsize):
    """Row tile sized by bytes-per-step, capped by a conservative VMEM budget."""
    # ~2 MiB of HBM traffic per input per grid step (amortize ~0.35us overhead)
    tm_hbm = (2 << 20) // max(f * itemsize, 1)
    # VMEM: 2 inputs x 2 buffers x (tm x roundup(F,128) x itemsize)
    #       + 2 label buffers x (tm x 512 B)   must stay well under the limit
    lane_row_bytes = _round_up(f, 128) * itemsize
    tm_vmem = (12 << 20) // (4 * lane_row_bytes + 2 * 512)
    return max(8, min(tm_hbm, tm_vmem))


def siamese_bce_loss(x1, x2, label, *, tile_rows=None):
    """Pallas implementation of SiameseBCELoss.forward (mean reduction)."""
    e, f = x1.shape
    assert x2.shape == (e, f) and label.shape == (e,)

    itemsize = max(x1.dtype.itemsize, x2.dtype.itemsize)
    tm_auto = _auto_tile_rows(e, f, itemsize)
    tm = tm_auto if tile_rows is None else tile_rows
    tm = min(tm, _round_up(e, 8))          # never larger than needed
    tm = max(8, _round_up(tm, 8))          # sublane multiple

    tiles_total = pl.cdiv(e, tm)
    tiles_per_core = pl.cdiv(tiles_total, _NUM_CORE_SPLITS)

    y2d = label.reshape(e, 1)              # no dtype cast, no padding

    def row_block(c, i):
        # clamp so the (rare) extra tile of an odd split re-reads a valid
        # block; the kernel fully masks it via the unclamped row index.
        return (jnp.minimum(c * tiles_per_core + i, tiles_total - 1), 0)

    kernel = functools.partial(_siamese_bce_kernel, tm=tm,
                               tiles_per_core=tiles_per_core, num_rows=e)

    cost = pl.CostEstimate(
        flops=2 * e * f + 8 * e,
        transcendentals=2 * e,
        bytes_accessed=(2 * e * f + e) * itemsize + _NUM_CORE_SPLITS * 4,
    )

    out = pl.pallas_call(
        kernel,
        out_shape=jax.ShapeDtypeStruct((_NUM_CORE_SPLITS, 1, 1), jnp.float32),
        grid_spec=pltpu.PrefetchScalarGridSpec(
            num_scalar_prefetch=0,
            grid=(_NUM_CORE_SPLITS, tiles_per_core),
            in_specs=[
                pl.BlockSpec((tm, f), row_block),   # x1 row tile (native dtype)
                pl.BlockSpec((tm, f), row_block),   # x2 row tile (native dtype)
                pl.BlockSpec((tm, 1), row_block),   # label row tile
            ],
            # one resident (1,1,1) partial-sum block per core split
            out_specs=pl.BlockSpec((1, 1, 1), lambda c, i: (c, 0, 0)),
        ),
        compiler_params=pltpu.CompilerParams(
            dimension_semantics=("parallel", "arbitrary"),
            vmem_limit_bytes=32 * 1024 * 1024),
        cost_estimate=cost,
    )(x1, x2, y2d)

    # combine the per-core partial sums and take the mean (tiny XLA epilogue)
    return jnp.sum(out) / jnp.float32(e)


# ------------------------------ pure-JAX ref ------------------------------- #
def _ref_loss(x1, x2, y):
    z = jnp.sum(x1.astype(jnp.float32) * x2.astype(jnp.float32), axis=-1)
    y = y.astype(jnp.float32)
    per = jnp.maximum(z, 0.0) - z * y + jnp.log1p(jnp.exp(-jnp.abs(z)))
    return jnp.mean(per)


if __name__ == "__main__":
    key = jax.random.PRNGKey(0)
    k1, k2, k3 = jax.random.split(key, 3)

    # small shapes implied by the forward: x1, x2 are [E, F]; label is [E]
    E, F = 22, 32          # E not a tile multiple -> exercises ragged masking
    x1 = jax.random.normal(k1, (E, F), jnp.float32)
    x2 = jax.random.normal(k2, (E, F), jnp.float32)
    label = jax.random.bernoulli(k3, 0.5, (E,)).astype(jnp.float32)

    # tile_rows=8 -> tiles_total=3 over a (2, 2) grid: exercises per-split
    # accumulator init, interior (unmasked) tiles, the ragged edge tile, and
    # the clamped fully-masked duplicate tile.
    loss = siamese_bce_loss(x1, x2, label, tile_rows=8)
    jax.block_until_ready(loss)

    ref = _ref_loss(x1, x2, label)
    assert loss.shape == ()
    assert jnp.allclose(loss, ref, rtol=1e-5, atol=1e-6), (loss, ref)

    print("KERNEL_OK")
</pallas_src>

<mosaic_0001>
module attributes {stable_mosaic.version = 11 : i64} {
  func.func @_siamese_bce_kernel(%arg0: i32, %arg1: i32, %arg2: memref<8x32xf32, #tpu.memory_space<vmem>>, %arg3: memref<8x32xf32, #tpu.memory_space<vmem>>, %arg4: memref<8x1xf32, #tpu.memory_space<vmem>>, %arg5: memref<1x1x1xf32, #tpu.memory_space<vmem>>) attributes {dimension_semantics = [#tpu.dimension_semantics<parallel>, #tpu.dimension_semantics<arbitrary>], iteration_bounds = array<i64: 2, 2>, scalar_prefetch = 0 : i64, scratch_operands = 0 : i64, tpu.core_type = #tpu.core_type<tc>, window_params = [{transform_indices = @transform_0, window_bounds = array<i64: 8, 32>}, {transform_indices = @transform_1, window_bounds = array<i64: 8, 32>}, {transform_indices = @transform_2, window_bounds = array<i64: 8, 1>}, {transform_indices = @transform_3, window_bounds = array<i64: 1, 1, 1>}]} {
    %c2_i32 = arith.constant 2 : i32
    %0 = arith.muli %arg0, %c2_i32 : i32
    %1 = arith.addi %0, %arg1 : i32
    %c8_i32 = arith.constant 8 : i32
    %2 = arith.muli %1, %c8_i32 : i32
    %c0_i32 = arith.constant 0 : i32
    %3 = arith.cmpi eq, %arg1, %c0_i32 : i32
    %4 = arith.extui %3 : i1 to i32
    %c0_i32_0 = arith.constant 0 : i32
    %5 = arith.cmpi ne, %4, %c0_i32_0 : i32
    scf.if %5 {
      %cst_13 = arith.constant 0.000000e+00 : f32
      %30 = vector.broadcast %cst_13 : f32 to vector<1x1x1xf32>
      %c0_14 = arith.constant 0 : index
      %c0_15 = arith.constant 0 : index
      %c0_16 = arith.constant 0 : index
      %31 = vector.load %arg5[%c0_14, %c0_15, %c0_16] : memref<1x1x1xf32, #tpu.memory_space<vmem>>, vector<1x1x1xf32>
      tpu.vector_store %arg5[%c0_14, %c0_15, %c0_16], %30 {strides = array<i32>} : memref<1x1x1xf32, #tpu.memory_space<vmem>>, vector<1x1x1xf32>,
    } else {
    }
    %c0 = arith.constant 0 : index
    %c0_1 = arith.constant 0 : index
    %6 = vector.load %arg2[%c0, %c0_1] : memref<8x32xf32, #tpu.memory_space<vmem>>, vector<8x32xf32>
    %c0_2 = arith.constant 0 : index
    %c0_3 = arith.constant 0 : index
    %7 = vector.load %arg3[%c0_2, %c0_3] : memref<8x32xf32, #tpu.memory_space<vmem>>, vector<8x32xf32>
    %c0_4 = arith.constant 0 : index
    %c0_5 = arith.constant 0 : index
    %8 = vector.load %arg4[%c0_4, %c0_5] : memref<8x1xf32, #tpu.memory_space<vmem>>, vector<8x1xf32>
    %9 = arith.mulf %6, %7 : vector<8x32xf32>
    %cst = arith.constant dense<0.000000e+00> : vector<8xf32>
    %10 = vector.multi_reduction <add>, %9, %cst [1] : vector<8x32xf32> to vector<8xf32>
    %11 = vector.shape_cast %10 : vector<8xf32> to vector<8x1xf32>
    %cst_6 = arith.constant 0.000000e+00 : f32
    %12 = vector.broadcast %cst_6 : f32 to vector<8x1xf32>
    %13 = arith.maximumf %11, %12 : vector<8x1xf32>
    %14 = arith.mulf %11, %8 : vector<8x1xf32>
    %15 = arith.subf %13, %14 : vector<8x1xf32>
    %16 = math.absf %11 : vector<8x1xf32>
    %cst_7 = arith.constant 0.000000e+00 : f32
    %17 = vector.broadcast %cst_7 : f32 to vector<8x1xf32>
    %18 = arith.subf %17, %16 : vector<8x1xf32>
    %19 = math.exp %18 : vector<8x1xf32>
    %20 = math.log1p %19 : vector<8x1xf32>
    %21 = arith.addf %15, %20 : vector<8x1xf32>
    %c8_i32_8 = arith.constant 8 : i32
    %22 = arith.addi %2, %c8_i32_8 : i32
    %c22_i32 = arith.constant 22 : i32
    %23 = arith.cmpi sle, %22, %c22_i32 : i32
    %c8_i32_9 = arith.constant 8 : i32
    %24 = arith.addi %2, %c8_i32_9 : i32
    %c22_i32_10 = arith.constant 22 : i32
    %25 = arith.cmpi sgt, %24, %c22_i32_10 : i32
    %26 = arith.extui %23 : i1 to i32
    %c0_i32_11 = arith.constant 0 : i32
    %27 = arith.cmpi ne, %26, %c0_i32_11 : i32
    scf.if %27 {
      %c0_13 = arith.constant 0 : index
      %c0_14 = arith.constant 0 : index
      %c0_15 = arith.constant 0 : index
      %30 = vector.load %arg5[%c0_13, %c0_14, %c0_15] : memref<1x1x1xf32, #tpu.memory_space<vmem>>, vector<1x1x1xf32>
      %31 = vector.shape_cast %21 : vector<8x1xf32> to vector<1x8x1xf32>
      %cst_16 = arith.constant dense<0.000000e+00> : vector<1xf32>
      %32 = vector.multi_reduction <add>, %31, %cst_16 [1, 2] : vector<1x8x1xf32> to vector<1xf32>
      %33 = vector.shape_cast %32 : vector<1xf32> to vector<1x1x1xf32>
      %34 = vector.extract %33[0, 0, 0] : f32 from vector<1x1x1xf32>
      %35 = vector.broadcast %34 : f32 to vector<1x1xf32>
      %36 = vector.shape_cast %35 : vector<1x1xf32> to vector<1x1x1xf32>
      %37 = arith.addf %30, %36 : vector<1x1x1xf32>
      %c0_17 = arith.constant 0 : index
      %c0_18 = arith.constant 0 : index
      %c0_19 = arith.constant 0 : index
      %38 = vector.load %arg5[%c0_17, %c0_18, %c0_19] : memref<1x1x1xf32, #tpu.memory_space<vmem>>, vector<1x1x1xf32>
      tpu.vector_store %arg5[%c0_17, %c0_18, %c0_19], %37 {strides = array<i32>} : memref<1x1x1xf32, #tpu.memory_space<vmem>>, vector<1x1x1xf32>,
    } else {
    }
    %28 = arith.extui %25 : i1 to i32
    %c0_i32_12 = arith.constant 0 : i32
    %29 = arith.cmpi ne, %28, %c0_i32_12 : i32
    scf.if %29 {
      %30 = tpu.iota {dimensions = array<i32: 0>} : vector<8x1xi32>
      %31 = vector.broadcast %2 : i32 to vector<8x1xi32>
      %32 = arith.addi %31, %30 : vector<8x1xi32>
      %c22_i32_13 = arith.constant 22 : i32
      %33 = vector.broadcast %c22_i32_13 : i32 to vector<8x1xi32>
      %34 = arith.cmpi slt, %32, %33 : vector<8x1xi32>
      %cst_14 = arith.constant 0.000000e+00 : f32
      %35 = vector.broadcast %cst_14 : f32 to vector<8x1xf32>
      %36 = arith.select %34, %21, %35 : vector<8x1xi1>, vector<8x1xf32>
      %c0_15 = arith.constant 0 : index
      %c0_16 = arith.constant 0 : index
      %c0_17 = arith.constant 0 : index
      %37 = vector.load %arg5[%c0_15, %c0_16, %c0_17] : memref<1x1x1xf32, #tpu.memory_space<vmem>>, vector<1x1x1xf32>
      %38 = vector.shape_cast %36 : vector<8x1xf32> to vector<1x8x1xf32>
      %cst_18 = arith.constant dense<0.000000e+00> : vector<1xf32>
      %39 = vector.multi_reduction <add>, %38, %cst_18 [1, 2] : vector<1x8x1xf32> to vector<1xf32>
      %40 = vector.shape_cast %39 : vector<1xf32> to vector<1x1x1xf32>
      %41 = vector.extract %40[0, 0, 0] : f32 from vector<1x1x1xf32>
      %42 = vector.broadcast %41 : f32 to vector<1x1xf32>
      %43 = vector.shape_cast %42 : vector<1x1xf32> to vector<1x1x1xf32>
      %44 = arith.addf %37, %43 : vector<1x1x1xf32>
      %c0_19 = arith.constant 0 : index
      %c0_20 = arith.constant 0 : index
      %c0_21 = arith.constant 0 : index
      %45 = vector.load %arg5[%c0_19, %c0_20, %c0_21] : memref<1x1x1xf32, #tpu.memory_space<vmem>>, vector<1x1x1xf32>
      tpu.vector_store %arg5[%c0_19, %c0_20, %c0_21], %44 {strides = array<i32>} : memref<1x1x1xf32, #tpu.memory_space<vmem>>, vector<1x1x1xf32>,
    } else {
    }
    return
  }
  func.func @transform_0(%arg0: i32, %arg1: i32) -> (i32, i32) {
    %c2_i32 = arith.constant 2 : i32
    %0 = arith.muli %arg0, %c2_i32 : i32
    %1 = arith.addi %0, %arg1 : i32
    %c2_i32_0 = arith.constant 2 : i32
    %2 = arith.minsi %1, %c2_i32_0 : i32
    %c0_i32 = arith.constant 0 : i32
    %c0_i32_1 = arith.constant 0 : i32
    return %2, %c0_i32 : i32, i32
  }
  func.func @transform_1(%arg0: i32, %arg1: i32) -> (i32, i32) {
    %c2_i32 = arith.constant 2 : i32
    %0 = arith.muli %arg0, %c2_i32 : i32
    %1 = arith.addi %0, %arg1 : i32
    %c2_i32_0 = arith.constant 2 : i32
    %2 = arith.minsi %1, %c2_i32_0 : i32
    %c0_i32 = arith.constant 0 : i32
    %c0_i32_1 = arith.constant 0 : i32
    return %2, %c0_i32 : i32, i32
  }
  func.func @transform_2(%arg0: i32, %arg1: i32) -> (i32, i32) {
    %c2_i32 = arith.constant 2 : i32
    %0 = arith.muli %arg0, %c2_i32 : i32
    %1 = arith.addi %0, %arg1 : i32
    %c2_i32_0 = arith.constant 2 : i32
    %2 = arith.minsi %1, %c2_i32_0 : i32
    %c0_i32 = arith.constant 0 : i32
    %c0_i32_1 = arith.constant 0 : i32
    return %2, %c0_i32 : i32, i32
  }
  func.func @transform_3(%arg0: i32, %arg1: i32) -> (i32, i32, i32) {
    %c0_i32 = arith.constant 0 : i32
    %c0_i32_0 = arith.constant 0 : i32
    %c0_i32_1 = arith.constant 0 : i32
    return %arg0, %c0_i32, %c0_i32_0 : i32, i32, i32
  }
}

</mosaic_0001>

<llo_original>
// kernel: tpu_custom_call.1
$region0: #{tpu_custom_call.1}
  #allocation0 [shape = 'u32[]', space=smem, size = 0x4, offset = 0x4, fixed_abs, tag = 'smem constant byte address 0x4 - core index']
  #allocation1 [shape = 'u32[72,128]{1,0:T(1,128)}', space=vmem, size = 0x9000, scoped, tag = 'internal scratch']
  %s0 = inlined_call_operand.vmem [shape: f32[22,32], index: 0, kind: input, shape index: {}]
  %s1 = inlined_call_operand.hbm [shape: f32[22,32], index: 1, kind: input, shape index: {}]
  %s2 = inlined_call_operand.vmem [shape: f32[22,1], index: 2, kind: input, shape index: {}]
  %s3 = inlined_call_operand.vmem [shape: f32[2,1,1], index: 3, kind: output, shape index: {}]
  %s4 = sld [smem:[#allocation0]]
  $region61: #{tpu_custom_call.1} parent=0
    _
  %s6 = ssub.s32 1, %s4
  %s7 = scalar_select 0, %s6, %s4
  $region1: #{tpu_custom_call.1} parent=0
    #allocation2 [shape = 'u8[8192]{0}', space=vmem, size = 0x2000, scoped, tag = 'input window, operand 1']
    #allocation3 [shape = 's32[2]{0}', space=sflag, size = 0x8, scoped, tag = 'scoped memory for tpu_custom_call.1']
    %8 = vsyncpa [#allocation3], 0
    %s9 = scalar_lea.sflag [#allocation3], 1
    %10 = vsyncpa %s9, 0
    loop: start=0, step=1, limit=6
    $region2: #{tpu_custom_call.1} parent=1 // loop_pre_header
      _
    $region3: #{tpu_custom_call.1} parent=1 // loop_header
      %s12 = sphi 0, %s16
      %p13 = scmp.ge.s32.totalorder %s12, 6
      %s19 = sphi 0, %s31
      %s20 = sphi 0, %s27
      %s21 = sphi 0, %s19
      %s22 = sphi 0, %s20
      %s23 = sphi 0, %s21
      %s24 = sphi 0, %s22
      %s42 = sphi 0, %s44
      %s45 = sphi 0, %s42
      %s46 = sphi 0, %s45
      %s62 = sphi 0, %s46
      %s76 = sphi 0, %s78
      %s79 = sphi 0, %s76
      %s80 = sphi 0, %s79
      %s96 = sphi 0, %s80
      %s110 = sphi 0, %s112
      %s113 = sphi 0, %s110
      %s114 = sphi 0, %s113
      %s130 = sphi 0, %s114
      %s136 = sphi 0, %s138
      %s139 = sphi 0, %s136
      %s140 = sphi 0, %s139
      %s156 = sphi 0, %s140
    $region4: #{tpu_custom_call.1} parent=1 // loop_header_branch
      %15 = sbr.rel (%p13) target = $region8
    $region5: #{tpu_custom_call.1} parent=1 // loop_body
      %s17 = ssub.s32 %s12, 1
      %s18 = ssub.s32 %s12, 2
      %s25 = sadd.s32 1, %s20
      %p26 = scmp.ge.s32.totalorder %s25, 2
      %s27 = scalar_select %p26, 0, %s25
      %s28 = sadd.s32 1, %s19
      %s29 = scalar_select %p26, %s28, %s19
      %p30 = scmp.ge.s32.totalorder %s29, 2
      %s31 = scalar_select %p30, 0, %s29
      %s32 = smul.u32 %s19, 2
      %s33 = sadd.s32 %s32, %s20
      %p34 = scmp.lt.s32.totalorder %s33, 2
      %s35 = scalar_select %p34, %s33, 2
      %s36 = smul.u32 %s31, 2
      %s37 = sadd.s32 %s36, %s27
      %p38 = scmp.lt.s32.totalorder %s37, 2
      %s39 = scalar_select %p38, %s37, 2
      %s40 = ssub.s32 %s35, %s39
      %p41 = scmp.eq.s32.totalorder %s40, 0
      %s43 = sadd.s32 %s42, 1
      %s44 = scalar_select %p41, %s42, %s43
      %p47 = pneg %p41
      %p48 = scmp.eq.s32.totalorder %s12, 3
      %p49 = por %p47, %p48
      %p50 = scmp.ne.s32.totalorder %s42, %s45
      %p51 = scmp.eq.s32.totalorder %s12, 0
      %p52 = por %p50, %p51
      %p53 = scmp.ne.s32.totalorder %s42, %s45
      %p54 = scmp.eq.s32.totalorder %s17, 3
      %p55 = por %p53, %p54
      %p56 = scmp.ne.s32.totalorder %s45, %s46
      %p57 = scmp.eq.s32.totalorder %s17, 0
      %p58 = por %p56, %p57
      %p59 = scmp.ne.s32.totalorder %s45, %s46
      %p60 = scmp.eq.s32.totalorder %s18, 3
      %p61 = por %p59, %p60
      %p63 = scmp.ne.s32.totalorder %s46, %s62
      %p64 = scmp.eq.s32.totalorder %s18, 0
      %p65 = por %p63, %p64
      %s66 = smul.u32 %s19, 2
      %s67 = sadd.s32 %s66, %s20
      %p68 = scmp.lt.s32.totalorder %s67, 2
      %s69 = scalar_select %p68, %s67, 2
      %s70 = smul.u32 %s31, 2
      %s71 = sadd.s32 %s70, %s27
      %p72 = scmp.lt.s32.totalorder %s71, 2
      %s73 = scalar_select %p72, %s71, 2
      %s74 = ssub.s32 %s69, %s73
      %p75 = scmp.eq.s32.totalorder %s74, 0
      %s77 = sadd.s32 %s76, 1
      %s78 = scalar_select %p75, %s76, %s77
      %p81 = pneg %p75
      %p82 = scmp.eq.s32.totalorder %s12, 3
      %p83 = por %p81, %p82
      %p84 = scmp.ne.s32.totalorder %s76, %s79
      %p85 = scmp.eq.s32.totalorder %s12, 0
      %p86 = por %p84, %p85
      %p87 = scmp.ne.s32.totalorder %s76, %s79
      %p88 = scmp.eq.s32.totalorder %s17, 3
      %p89 = por %p87, %p88
      %p90 = scmp.ne.s32.totalorder %s79, %s80
      %p91 = scmp.eq.s32.totalorder %s17, 0
      %p92 = por %p90, %p91
      %p93 = scmp.ne.s32.totalorder %s79, %s80
      %p94 = scmp.eq.s32.totalorder %s18, 3
      %p95 = por %p93, %p94
      %p97 = scmp.ne.s32.totalorder %s80, %s96
      %p98 = scmp.eq.s32.totalorder %s18, 0
      %p99 = por %p97, %p98
      %s100 = smul.u32 %s19, 2
      %s101 = sadd.s32 %s100, %s20
      %p102 = scmp.lt.s32.totalorder %s101, 2
      %s103 = scalar_select %p102, %s101, 2
      %s104 = smul.u32 %s31, 2
      %s105 = sadd.s32 %s104, %s27
      %p106 = scmp.lt.s32.totalorder %s105, 2
      %s107 = scalar_select %p106, %s105, 2
      %s108 = ssub.s32 %s103, %s107
      %p109 = scmp.eq.s32.totalorder %s108, 0
      %s111 = sadd.s32 %s110, 1
      %s112 = scalar_select %p109, %s110, %s111
      %p115 = pneg %p109
      %p116 = scmp.eq.s32.totalorder %s12, 3
      %p117 = por %p115, %p116
      %p118 = scmp.ne.s32.totalorder %s110, %s113
      %p119 = scmp.eq.s32.totalorder %s12, 0
      %p120 = por %p118, %p119
      %p121 = scmp.ne.s32.totalorder %s110, %s113
      %p122 = scmp.eq.s32.totalorder %s17, 3
      %p123 = por %p121, %p122
      %p124 = scmp.ne.s32.totalorder %s113, %s114
      %p125 = scmp.eq.s32.totalorder %s17, 0
      %p126 = por %p124, %p125
      %p127 = scmp.ne.s32.totalorder %s113, %s114
      %p128 = scmp.eq.s32.totalorder %s18, 3
      %p129 = por %p127, %p128
      %p131 = scmp.ne.s32.totalorder %s114, %s130
      %p132 = scmp.eq.s32.totalorder %s18, 0
      %p133 = por %p131, %p132
      %s134 = ssub.s32 %s19, %s31
      %p135 = scmp.eq.s32.totalorder %s134, 0
      %s137 = sadd.s32 %s136, 1
      %s138 = scalar_select %p135, %s136, %s137
      %p141 = pneg %p135
      %p142 = scmp.eq.s32.totalorder %s12, 3
      %p143 = por %p141, %p142
      %p144 = scmp.ne.s32.totalorder %s136, %s139
      %p145 = scmp.eq.s32.totalorder %s12, 0
      %p146 = por %p144, %p145
      %p147 = scmp.ne.s32.totalorder %s136, %s139
      %p148 = scmp.eq.s32.totalorder %s17, 3
      %p149 = por %p147, %p148
      %p150 = scmp.ne.s32.totalorder %s139, %s140
      %p151 = scmp.eq.s32.totalorder %s17, 0
      %p152 = por %p150, %p151
      %p153 = scmp.ne.s32.totalorder %s139, %s140
      %p154 = scmp.eq.s32.totalorder %s18, 3
      %p155 = por %p153, %p154
      %p157 = scmp.ne.s32.totalorder %s140, %s156
      %p158 = scmp.eq.s32.totalorder %s18, 0
      %p159 = por %p157, %p158
      %p160 = scmp.le.s32.totalorder 1, %s12
      %p161 = scmp.lt.s32.totalorder %s12, 5
      %p162 = pnand %p160, %p161
      %p163 = pneg %p162
      // Predicated region
      $region9: #{tpu_custom_call.1} parent=5 // pred_check
        _
      $region10: #{tpu_custom_call.1} parent=5 // pred_check_branch
        %165 = sbr.rel (%p162) target = $region12
      $region11: #{tpu_custom_call.1} parent=5 // pred_region
        %s166 = ssub.s32 %s12, 1
      $region12: #{tpu_custom_call.1} parent=5 // pred_fallthru
        _
      %p167 = scmp.lt.s32.totalorder %s12, 4
      // Predicated region
      $region13: #{tpu_custom_call.1} parent=5 // pred_check
        %p168 = pneg %p167
      $region14: #{tpu_custom_call.1} parent=5 // pred_check_branch
        %170 = sbr.rel (%p168) target = $region16
      $region15: #{tpu_custom_call.1} parent=5 // pred_region
        // Predicated region
        $region17: #{tpu_custom_call.1} parent=15 // pred_check
          %p171 = pneg %p52
        $region18: #{tpu_custom_call.1} parent=15 // pred_check_branch
          %173 = sbr.rel (%p171) target = $region20
        $region19: #{tpu_custom_call.1} parent=15 // pred_region
          %s174 = smul.u32 %s19, 2
          %s175 = sadd.s32 %s174, %s20
          %p176 = scmp.lt.s32.totalorder %s175, 2
          %s177 = scalar_select %p176, %s175, 2
          %p178 = scmp.lt.s32.totalorder %s177, 2
          %s179 = scalar_select %p178, %s177, 2
          %s180 = smul.addr %s179, 8
          %s181 = scalar_lea.vmem %s0, %s180
          %s182 = smul.u32 %s19, 2
          %s183 = sadd.s32 %s182, %s20
          %p184 = scmp.lt.s32.totalorder %s183, 2
          %s185 = scalar_select %p184, %s183, 2
        $region20: #{tpu_custom_call.1} parent=15 // pred_fallthru
          _
        // Predicated region
        $region21: #{tpu_custom_call.1} parent=15 // pred_check
          %p186 = pneg %p86
        $region22: #{tpu_custom_call.1} parent=15 // pred_check_branch
          %188 = sbr.rel (%p186) target = $region24
        $region23: #{tpu_custom_call.1} parent=15 // pred_region
          %s189 = sand.u32 %s76, 1
          %s190 = scalar_lea.sflag [#allocation3], %s189
          %s191 = sand.u32 %s76, 1
          %s192 = smul.addr %s191, 8
          %s193 = scalar_lea.vmem [#allocation2], %s192
          %s194 = smul.u32 %s19, 2
          %s195 = sadd.s32 %s194, %s20
          %p196 = scmp.lt.s32.totalorder %s195, 2
          %s197 = scalar_select %p196, %s195, 2
          %199 = vsyncadd %s190, 0
          %s200 = smul.addr %s197, 8
          %s201 = scalar_lea.hbm %s1, %s200
          %s203 = sshll.u32 %s201, 4
          %s204 = int_to_ptr.hbm [resolvable:$true] %s203
          %s205 = sshll.u32 %s193, 4
          %s206 = int_to_ptr.vmem [resolvable:$true] %s205
          %208 = dma.hbm_to_vmem [thread:$0]  %s204, 128, %s206, %s190
        $region24: #{tpu_custom_call.1} parent=15 // pred_fallthru
          _
        // Predicated region
        $region25: #{tpu_custom_call.1} parent=15 // pred_check
          %p209 = pneg %p120
        $region26: #{tpu_custom_call.1} parent=15 // pred_check_branch
          %211 = sbr.rel (%p209) target = $region28
        $region27: #{tpu_custom_call.1} parent=15 // pred_region
          %s212 = smul.u32 %s19, 2
          %s213 = sadd.s32 %s212, %s20
          %p214 = scmp.lt.s32.totalorder %s213, 2
          %s215 = scalar_select %p214, %s213, 2
          %p216 = scmp.lt.s32.totalorder %s215, 2
          %s217 = scalar_select %p216, %s215, 2
          %s218 = smul.addr %s217, 8
          %s219 = scalar_lea.vmem %s2, %s218
          %s220 = smul.u32 %s19, 2
          %s221 = sadd.s32 %s220, %s20
          %p222 = scmp.lt.s32.totalorder %s221, 2
          %s223 = scalar_select %p222, %s221, 2
        $region28: #{tpu_custom_call.1} parent=15 // pred_fallthru
          _
      $region16: #{tpu_custom_call.1} parent=5 // pred_fallthru
        _
      %p224 = scmp.le.s32.totalorder 1, %s12
      %p225 = scmp.lt.s32.totalorder %s12, 5
      %p226 = pnand %p224, %p225
      %p227 = pneg %p226
      // Predicated region
      $region29: #{tpu_custom_call.1} parent=5 // pred_check
        _
      $region30: #{tpu_custom_call.1} parent=5 // pred_check_branch
        %229 = sbr.rel (%p226) target = $region32
      $region31: #{tpu_custom_call.1} parent=5 // pred_region
        %s230 = ssub.s32 %s12, 1
        %s231 = sand.u32 %s79, 1
        %s232 = scalar_lea.sflag [#allocation3], %s231
        %s233 = sand.u32 %s79, 1
        %s234 = smul.addr %s233, 8
        %s235 = scalar_lea.vmem [#allocation2], %s234
        // Predicated region
        $region33: #{tpu_custom_call.1} parent=31 // pred_check
          %p236 = pneg %p92
        $region34: #{tpu_custom_call.1} parent=31 // pred_check_branch
          %238 = sbr.rel (%p236) target = $region36
        $region35: #{tpu_custom_call.1} parent=31 // pred_region
          %240 = dma.done %s232, 128
        $region36: #{tpu_custom_call.1} parent=31 // pred_fallthru
          _
        %s241 = smul.u32 %s21, 2
        %s242 = sadd.s32 %s241, %s22
        %p243 = scmp.lt.s32.totalorder %s242, 2
        %s244 = scalar_select %p243, %s242, 2
        %p245 = scmp.lt.s32.totalorder %s244, 2
        %s246 = scalar_select %p245, %s244, 2
        %s247 = smul.addr %s246, 8
        %s248 = scalar_lea.vmem %s0, %s247
        %p249 = pneg %p58
        %p250 = pneg %p55
        %s251 = sand.u32 %s79, 1
        %s252 = scalar_lea.sflag [#allocation3], %s251
        %s253 = sand.u32 %s79, 1
        %s254 = smul.addr %s253, 8
        %s255 = scalar_lea.vmem [#allocation2], %s254
        %p256 = pneg %p92
        %p257 = pneg %p89
        %s258 = smul.u32 %s21, 2
        %s259 = sadd.s32 %s258, %s22
        %p260 = scmp.lt.s32.totalorder %s259, 2
        %s261 = scalar_select %p260, %s259, 2
        %p262 = scmp.lt.s32.totalorder %s261, 2
        %s263 = scalar_select %p262, %s261, 2
        %s264 = smul.addr %s263, 8
        %s265 = scalar_lea.vmem %s2, %s264
        %p266 = pneg %p126
        %p267 = pneg %p123
        %p268 = pneg %p152
        %p269 = pneg %p149
        %p270 = scmp.lt.s32.totalorder %s21, 1
        %s271 = scalar_select %p270, %s21, 1
        %s272 = scalar_lea.vmem %s3, %s271
        %s273 = smul.u32 %s21, 2
        %s274 = sadd.s32 %s273, %s22
        %p275 = scmp.lt.s32.totalorder %s274, 2
        %s276 = scalar_select %p275, %s274, 2
        %p277 = scmp.lt.s32.totalorder %s276, 2
        %s278 = scalar_select %p277, %s276, 2
        %s279 = smul.addr %s278, 8
        %s280 = scalar_lea.vmem %s0, %s279
        %s281 = smul.u32 %s21, 2
        %s282 = sadd.s32 %s281, %s22
        %p283 = scmp.lt.s32.totalorder %s282, 2
        %s284 = scalar_select %p283, %s282, 2
        %s285 = smul.u32 %s21, 2
        %s286 = sadd.s32 %s285, %s22
        %p287 = scmp.lt.s32.totalorder %s286, 2
        %s288 = scalar_select %p287, %s286, 2
        %s289 = smul.u32 %s21, 2
        %s290 = sadd.s32 %s289, %s22
        %p291 = scmp.lt.s32.totalorder %s290, 2
        %s292 = scalar_select %p291, %s290, 2
        %p293 = scmp.lt.s32.totalorder %s292, 2
        %s294 = scalar_select %p293, %s292, 2
        %s295 = smul.addr %s294, 8
        %s296 = scalar_lea.vmem %s2, %s295
        %s297 = smul.u32 %s21, 2
        %s298 = sadd.s32 %s297, %s22
        %p299 = scmp.lt.s32.totalorder %s298, 2
        %s300 = scalar_select %p299, %s298, 2
        %p301 = scmp.lt.s32.totalorder %s21, 1
        %s302 = scalar_select %p301, %s21, 1
        %s303 = scalar_lea.vmem %s3, %s302
        %s304 = smul.u32 %s21, 2
        %s305 = sadd.s32 %s304, %s22
        %s306 = smul.u32 %s305, 8
        %p307 = scmp.eq.s32.totalorder %s22, 0
        // Predicated region
        $region37: #{tpu_custom_call.1} parent=31 // pred_check
          %p308 = pneg %p307
        $region38: #{tpu_custom_call.1} parent=31 // pred_check_branch
          %310 = sbr.rel (%p308) target = $region40
        $region39: #{tpu_custom_call.1} parent=31 // pred_region
          %vm311 = vcmask 0
          %312 = vst.msk [vmem:[%s303] sm:$0x1] %vm311, 0.0
        $region40: #{tpu_custom_call.1} parent=31 // pred_fallthru
          _
        %v313 = vld [vmem:[%s280] sm:$0xff]
        %v314 = vld [vmem:[%s235] sm:$0xff]
        %v315 = vld [vmem:[%s296] sm:$0xff]
        %v316 = vmul.f32 %v313, %v314
        %vm317 = vcmask 261120
        %v318 = vsel %vm317, %v316, 0.0
        %319 = vadd.xlane.f32.xlu0 %v318
        %v320 = vpop.xlane.xlu0 %319
        %v321 = vmax.f32 %v320, 0.0
        %v322 = vmul.f32 %v320, %v315
        %v323 = vsub.f32 %v321, %v322
        %v324 = vand.u32 2147483647, %v320
        %v325 = vsub.f32 0.0, %v324
        %v326 = vmul.f32 %v325, 1.442695
        %v327 = vpow.pop %v326
        %v328 = vadd.f32 %v327, 1.0
        %v329 = vlog2.pop %v328
        %v330 = vmul.f32 %v329, 0.6931472
        %v331 = vmul.f32 -0.5, %v327
        %v332 = vadd.f32 %v331, 1.0
        %v333 = vmul.f32 %v332, %v327
        %v334 = vand.u32 2147483647, %v327
        %vm335 = vcmp.lt.f32.partialorder %v334, 0.0004427343
        %v336 = vsel %vm335, %v333, %v330
        %v337 = vadd.f32 %v323, %v336
        %s338 = sadd.s32 %s306, 8
        %p339 = scmp.le.s32.totalorder %s338, 22
        %p340 = scmp.gt.s32.totalorder %s338, 22
        // Predicated region
        $region41: #{tpu_custom_call.1} parent=31 // pred_check
          %p341 = pneg %p339
        $region42: #{tpu_custom_call.1} parent=31 // pred_check_branch
          %343 = sbr.rel (%p341) target = $region44
        $region43: #{tpu_custom_call.1} parent=31 // pred_region
          %v344 = vld [vmem:[%s303] sm:$0x1]
          %vm345 = vcmask 7168
          %v346 = vsel %vm345, %v337, 0.0
          %347 = vadd.xlane.f32.xlu0 %v346
          %v348 = vpop.xlane.xlu0 %347
          %v349 = vrot.slane %v348, 4
          %v350 = vadd.f32 %v348, %v349
          %v351 = vrot.slane %v350, 2
          %v352 = vadd.f32 %v350, %v351
          %v353 = vrot.slane %v352, 1
          %v354 = vadd.f32 %v352, %v353
          %s355 = vtos %v354
          %v356 = vstv %s355
          %v357 = vadd.f32 %v344, %v356
          %vm358 = vcmask 0
          %359 = vst.msk [vmem:[%s303] sm:$0x1] %vm358, %v357
        $region44: #{tpu_custom_call.1} parent=31 // pred_fallthru
          _
        // Predicated region
        $region45: #{tpu_custom_call.1} parent=31 // pred_check
          %p360 = pneg %p340
        $region46: #{tpu_custom_call.1} parent=31 // pred_check_branch
          %362 = sbr.rel (%p360) target = $region48
        $region47: #{tpu_custom_call.1} parent=31 // pred_region
          %v363 = vlaneseq
          %v364 = vshrl.u32 %v363, 7
          %v365 = vstv %s306
          %v366 = vadd.s32 %v365, %v364
          %vm367 = vcmp.lt.s32.totalorder %v366, 22
          %v368 = vsel %vm367, %v337, 0.0
          %v369 = vld [vmem:[%s303] sm:$0x1]
          %vm370 = vcmask 7168
          %v371 = vsel %vm370, %v368, 0.0
          %372 = vadd.xlane.f32.xlu0 %v371
          %v373 = vpop.xlane.xlu0 %372
          %v374 = vrot.slane %v373, 4
          %v375 = vadd.f32 %v373, %v374
          %v376 = vrot.slane %v375, 2
          %v377 = vadd.f32 %v375, %v376
          %v378 = vrot.slane %v377, 1
          %v379 = vadd.f32 %v377, %v378
          %s380 = vtos %v379
          %v381 = vstv %s380
          %v382 = vadd.f32 %v369, %v381
          %vm383 = vcmask 0
          %384 = vst.msk [vmem:[%s303] sm:$0x1] %vm383, %v382
        $region48: #{tpu_custom_call.1} parent=31 // pred_fallthru
          _
        %p385 = scmp.lt.s32.totalorder %s21, 1
        %s386 = scalar_select %p385, %s21, 1
        %s387 = scalar_lea.vmem %s3, %s386
        // Predicated region
        $region49: #{tpu_custom_call.1} parent=31 // pred_check
          %p388 = pneg %p149
        $region50: #{tpu_custom_call.1} parent=31 // pred_check_branch
          %390 = sbr.rel (%p388) target = $region52
        $region51: #{tpu_custom_call.1} parent=31 // pred_region
          _
        $region52: #{tpu_custom_call.1} parent=31 // pred_fallthru
          _
      $region32: #{tpu_custom_call.1} parent=5 // pred_fallthru
        _
      %p391 = scmp.le.s32.totalorder 2, %s12
      // Predicated region
      $region53: #{tpu_custom_call.1} parent=5 // pred_check
        %p392 = pneg %p391
      $region54: #{tpu_custom_call.1} parent=5 // pred_check_branch
        %394 = sbr.rel (%p392) target = $region56
      $region55: #{tpu_custom_call.1} parent=5 // pred_region
        %s395 = ssub.s32 %s12, 2
        // Predicated region
        $region57: #{tpu_custom_call.1} parent=55 // pred_check
          %p396 = pneg %p155
        $region58: #{tpu_custom_call.1} parent=55 // pred_check_branch
          %398 = sbr.rel (%p396) target = $region60
        $region59: #{tpu_custom_call.1} parent=55 // pred_region
          %p399 = scmp.lt.s32.totalorder %s23, 1
          %s400 = scalar_select %p399, %s23, 1
          %s401 = scalar_lea.vmem %s3, %s400
        $region60: #{tpu_custom_call.1} parent=55 // pred_fallthru
          _
      $region56: #{tpu_custom_call.1} parent=5 // pred_fallthru
        _
    $region6: #{tpu_custom_call.1} parent=1 // loop_footer
      %s16 = sadd.s32 1, %s12
    $region7: #{tpu_custom_call.1} parent=1 // loop_footer_branch
      %11 = sbr.rel target = $region3
    $region8: #{tpu_custom_call.1} parent=1 // loop_exit
      _
    %402 = vsyncpa [#allocation3], 1
    %s403 = scalar_lea.sflag [#allocation3], 1
    %404 = vsyncpa %s403, 1

</llo_original>
